<compile_context>
chip_gen: v7x
topology: tpu7x:2x2x1
jax: 0.10.0
libtpu: 0.0.40
codegen_flags: <defaults>
</compile_context>

<pallas_src>
import functools

import jax
import jax.numpy as jnp
from jax.experimental import pallas as pl
from jax.experimental.pallas import tpu as pltpu


def _round_up(x, m):
    return ((x + m - 1) // m) * m


# ----------------------------------------------------------------- kernel ----

def _make_decoder_kernel(nlayers):
    """Builds the fused decoder-step kernel for a fixed (static) layer count."""

    def kernel(*refs):
        tok_ref, emb_ref, h_in_ref, c_in_ref = refs[:4]
        layer_refs = refs[4:4 + 2 * nlayers]
        w_out_ref, b_out_ref = refs[4 + 2 * nlayers:6 + 2 * nlayers]
        pred_ref, h_out_ref, c_out_ref = refs[6 + 2 * nlayers:]

        b_pad = h_in_ref.shape[1]
        hid = h_in_ref.shape[2]
        v_pad = emb_ref.shape[0]

        # Embedding lookup as one-hot @ table (MXU). Token ids are SMEM scalars.
        # TODO(synk): for large vocabularies replace with a scalar-prefetch row
        # gather instead of an O(B*V*E) one-hot matmul.
        row_iota = jax.lax.broadcasted_iota(jnp.int32, (b_pad, v_pad), 0)
        lane_iota = jax.lax.broadcasted_iota(jnp.int32, (b_pad, v_pad), 1)
        onehot = jnp.zeros((b_pad, v_pad), jnp.float32)
        for r in range(b_pad):
            hit = jnp.logical_and(row_iota == r, lane_iota == tok_ref[r])
            onehot = jnp.where(hit, 1.0, onehot)
        x = jnp.dot(onehot, emb_ref[...], preferred_element_type=jnp.float32)

        # TODO(synk): nn.Dropout is identity in eval mode; train-mode dropout
        # (pltpu.prng_*) is not implemented.

        # Stacked LSTM layers, one fused gate matmul per layer.
        for layer in range(nlayers):
            w_ref = layer_refs[2 * layer]          # [in+H, 4H] fused weights
            b_ref = layer_refs[2 * layer + 1]      # [1, 4H]
            h_prev = h_in_ref[layer]               # [B, H]
            c_prev = c_in_ref[layer]               # [B, H]
            xh = jnp.concatenate([x, h_prev], axis=1)           # [B, in+H]
            gates = (jnp.dot(xh, w_ref[...],
                             preferred_element_type=jnp.float32) + b_ref[...])
            i_g = jax.nn.sigmoid(gates[:, 0 * hid:1 * hid])
            f_g = jax.nn.sigmoid(gates[:, 1 * hid:2 * hid])
            g_g = jnp.tanh(gates[:, 2 * hid:3 * hid])
            o_g = jax.nn.sigmoid(gates[:, 3 * hid:4 * hid])
            c_new = f_g * c_prev + i_g * g_g
            h_new = o_g * jnp.tanh(c_new)
            h_out_ref[layer] = h_new
            c_out_ref[layer] = c_new
            x = h_new

        # Output projection (lane-dense padded vocab -> unmasked stores).
        pred_ref[...] = (jnp.dot(x, w_out_ref[...],
                                 preferred_element_type=jnp.float32)
                         + b_out_ref[...])

    return kernel


# ---------------------------------------------------------------- wrapper ----

def decoder_forward(params, tokens, hidden, cell):
    """tokens [B] int32, hidden/cell [nlayers, B, H] -> (pred [B, V], h, c)."""
    nlayers, batch, hid = hidden.shape
    b_pad = _round_up(max(batch, 8), 8)
    v_pad = params['w_out'].shape[1]
    out_dim = params['output_dim']

    tok_p = jnp.zeros((b_pad,), jnp.int32).at[:batch].set(tokens.astype(jnp.int32))
    h_p = jnp.zeros((nlayers, b_pad, hid), jnp.float32).at[:, :batch].set(hidden)
    c_p = jnp.zeros((nlayers, b_pad, hid), jnp.float32).at[:, :batch].set(cell)

    flat_lstm = []
    for (w, b) in params['lstm']:
        flat_lstm += [w, b]

    vmem = pl.BlockSpec(memory_space=pltpu.MemorySpace.VMEM)
    smem = pl.BlockSpec(memory_space=pltpu.MemorySpace.SMEM)

    pred_p, h_new_p, c_new_p = pl.pallas_call(
        _make_decoder_kernel(nlayers),
        out_shape=(jax.ShapeDtypeStruct((b_pad, v_pad), jnp.float32),
                   jax.ShapeDtypeStruct((nlayers, b_pad, hid), jnp.float32),
                   jax.ShapeDtypeStruct((nlayers, b_pad, hid), jnp.float32)),
        in_specs=[smem] + [vmem] * (3 + 2 * nlayers + 2),
        out_specs=(vmem, vmem, vmem),
    )(tok_p, params['emb'], h_p, c_p, *flat_lstm,
      params['w_out'], params['b_out'])

    return (pred_p[:batch, :out_dim],
            h_new_p[:, :batch, :],
            c_new_p[:, :batch, :])


# ------------------------------------------------------------- parameters ----

def make_params(output_dim, emb_dim, hidden_dim, nlayers, key):
    v_pad = _round_up(output_dim, 128)
    scale = 1.0 / float(hidden_dim) ** 0.5
    keys = jax.random.split(key, 3 + 3 * nlayers)

    emb = 0.1 * jax.random.normal(keys[0], (output_dim, emb_dim), jnp.float32)
    emb_pad = jnp.zeros((v_pad, emb_dim), jnp.float32).at[:output_dim].set(emb)

    lstm = []
    for layer in range(nlayers):
        in_dim = emb_dim if layer == 0 else hidden_dim
        k1, k2, k3 = keys[1 + 3 * layer: 4 + 3 * layer]
        w_ih = jax.random.uniform(k1, (in_dim, 4 * hidden_dim), jnp.float32,
                                  -scale, scale)
        w_hh = jax.random.uniform(k2, (hidden_dim, 4 * hidden_dim), jnp.float32,
                                  -scale, scale)
        b = jax.random.uniform(k3, (1, 4 * hidden_dim), jnp.float32,
                               -scale, scale)
        w = jnp.concatenate([w_ih, w_hh], axis=0)   # fused [in+H, 4H]
        lstm.append((w, b))

    kw, kb = keys[1 + 3 * nlayers: 3 + 3 * nlayers]
    w_out = jax.random.uniform(kw, (hidden_dim, output_dim), jnp.float32,
                               -scale, scale)
    b_out = jax.random.uniform(kb, (1, output_dim), jnp.float32, -scale, scale)
    w_out_pad = jnp.zeros((hidden_dim, v_pad), jnp.float32).at[:, :output_dim].set(w_out)
    b_out_pad = jnp.zeros((1, v_pad), jnp.float32).at[:, :output_dim].set(b_out)

    return dict(emb=emb_pad, lstm=lstm, w_out=w_out_pad, b_out=b_out_pad,
                output_dim=output_dim, hidden_dim=hidden_dim, nlayers=nlayers)


# -------------------------------------------------------------- reference ----

def reference_forward(params, tokens, hidden, cell):
    """Pure-jnp replica of PyTorch Decoder.forward (eval mode)."""
    prec = jax.lax.Precision.HIGHEST
    hid = params['hidden_dim']
    x = params['emb'][tokens]                              # [B, E]
    hs, cs = [], []
    for layer, (w, b) in enumerate(params['lstm']):
        xh = jnp.concatenate([x, hidden[layer]], axis=1)
        gates = jnp.dot(xh, w, precision=prec) + b
        i_g = jax.nn.sigmoid(gates[:, 0 * hid:1 * hid])
        f_g = jax.nn.sigmoid(gates[:, 1 * hid:2 * hid])
        g_g = jnp.tanh(gates[:, 2 * hid:3 * hid])
        o_g = jax.nn.sigmoid(gates[:, 3 * hid:4 * hid])
        c_new = f_g * cell[layer] + i_g * g_g
        h_new = o_g * jnp.tanh(c_new)
        hs.append(h_new)
        cs.append(c_new)
        x = h_new
    pred = jnp.dot(x, params['w_out'], precision=prec) + params['b_out']
    return (pred[:, :params['output_dim']], jnp.stack(hs), jnp.stack(cs))


# ------------------------------------------------------------------ main -----

if __name__ == "__main__":
    OUTPUT_DIM = 32     # target vocabulary size (padded to 128 lanes internally)
    EMB_DIM = 128
    HIDDEN_DIM = 128
    NLAYERS = 2
    BATCH = 4           # padded to 8 sublanes internally

    root = jax.random.PRNGKey(0)
    k_par, k_tok, k_h, k_c = jax.random.split(root, 4)

    params = make_params(OUTPUT_DIM, EMB_DIM, HIDDEN_DIM, NLAYERS, k_par)
    tokens = jax.random.randint(k_tok, (BATCH,), 0, OUTPUT_DIM, dtype=jnp.int32)
    hidden = 0.1 * jax.random.normal(k_h, (NLAYERS, BATCH, HIDDEN_DIM), jnp.float32)
    cell = 0.1 * jax.random.normal(k_c, (NLAYERS, BATCH, HIDDEN_DIM), jnp.float32)

    fwd = jax.jit(functools.partial(decoder_forward, params))
    pred, h_new, c_new = jax.block_until_ready(fwd(tokens, hidden, cell))

    assert pred.shape == (BATCH, OUTPUT_DIM)
    assert h_new.shape == (NLAYERS, BATCH, HIDDEN_DIM)
    assert c_new.shape == (NLAYERS, BATCH, HIDDEN_DIM)

    pred_r, h_r, c_r = reference_forward(params, tokens, hidden, cell)
    assert jnp.allclose(pred, pred_r, atol=5e-3, rtol=5e-3)
    assert jnp.allclose(h_new, h_r, atol=5e-3, rtol=5e-3)
    assert jnp.allclose(c_new, c_r, atol=5e-3, rtol=5e-3)

    print("KERNEL_OK")
</pallas_src>

<mosaic_0001>
module attributes {stable_mosaic.version = 11 : i64} {
  func.func @kernel(%arg0: memref<8xi32, #tpu.memory_space<smem>>, %arg1: memref<128x128xf32, #tpu.memory_space<vmem>>, %arg2: memref<2x8x128xf32, #tpu.memory_space<vmem>>, %arg3: memref<2x8x128xf32, #tpu.memory_space<vmem>>, %arg4: memref<256x512xf32, #tpu.memory_space<vmem>>, %arg5: memref<1x512xf32, #tpu.memory_space<vmem>>, %arg6: memref<256x512xf32, #tpu.memory_space<vmem>>, %arg7: memref<1x512xf32, #tpu.memory_space<vmem>>, %arg8: memref<128x128xf32, #tpu.memory_space<vmem>>, %arg9: memref<1x128xf32, #tpu.memory_space<vmem>>, %arg10: memref<8x128xf32, #tpu.memory_space<vmem>>, %arg11: memref<2x8x128xf32, #tpu.memory_space<vmem>>, %arg12: memref<2x8x128xf32, #tpu.memory_space<vmem>>) attributes {dimension_semantics = [], scalar_prefetch = 0 : i64, scratch_operands = 0 : i64, tpu.core_type = #tpu.core_type<tc>} {
    %0 = tpu.iota {dimensions = array<i32: 0>} : vector<8x128xi32>
    %1 = tpu.iota {dimensions = array<i32: 1>} : vector<8x128xi32>
    %cst = arith.constant 0.000000e+00 : f32
    %2 = vector.broadcast %cst : f32 to vector<8x128xf32>
    %c0_i32 = arith.constant 0 : i32
    %3 = vector.broadcast %c0_i32 : i32 to vector<8x128xi32>
    %4 = arith.cmpi eq, %0, %3 : vector<8x128xi32>
    %c0 = arith.constant 0 : index
    %5 = memref.load %arg0[%c0] : memref<8xi32, #tpu.memory_space<smem>>
    %6 = vector.broadcast %5 : i32 to vector<8x128xi32>
    %7 = arith.cmpi eq, %1, %6 : vector<8x128xi32>
    %8 = arith.andi %4, %7 : vector<8x128xi1>
    %cst_0 = arith.constant 1.000000e+00 : f32
    %9 = vector.broadcast %cst_0 : f32 to vector<8x128xf32>
    %10 = arith.select %8, %9, %2 : vector<8x128xi1>, vector<8x128xf32>
    %c1_i32 = arith.constant 1 : i32
    %11 = vector.broadcast %c1_i32 : i32 to vector<8x128xi32>
    %12 = arith.cmpi eq, %0, %11 : vector<8x128xi32>
    %c1 = arith.constant 1 : index
    %13 = memref.load %arg0[%c1] : memref<8xi32, #tpu.memory_space<smem>>
    %14 = vector.broadcast %13 : i32 to vector<8x128xi32>
    %15 = arith.cmpi eq, %1, %14 : vector<8x128xi32>
    %16 = arith.andi %12, %15 : vector<8x128xi1>
    %cst_1 = arith.constant 1.000000e+00 : f32
    %17 = vector.broadcast %cst_1 : f32 to vector<8x128xf32>
    %18 = arith.select %16, %17, %10 : vector<8x128xi1>, vector<8x128xf32>
    %c2_i32 = arith.constant 2 : i32
    %19 = vector.broadcast %c2_i32 : i32 to vector<8x128xi32>
    %20 = arith.cmpi eq, %0, %19 : vector<8x128xi32>
    %c2 = arith.constant 2 : index
    %21 = memref.load %arg0[%c2] : memref<8xi32, #tpu.memory_space<smem>>
    %22 = vector.broadcast %21 : i32 to vector<8x128xi32>
    %23 = arith.cmpi eq, %1, %22 : vector<8x128xi32>
    %24 = arith.andi %20, %23 : vector<8x128xi1>
    %cst_2 = arith.constant 1.000000e+00 : f32
    %25 = vector.broadcast %cst_2 : f32 to vector<8x128xf32>
    %26 = arith.select %24, %25, %18 : vector<8x128xi1>, vector<8x128xf32>
    %c3_i32 = arith.constant 3 : i32
    %27 = vector.broadcast %c3_i32 : i32 to vector<8x128xi32>
    %28 = arith.cmpi eq, %0, %27 : vector<8x128xi32>
    %c3 = arith.constant 3 : index
    %29 = memref.load %arg0[%c3] : memref<8xi32, #tpu.memory_space<smem>>
    %30 = vector.broadcast %29 : i32 to vector<8x128xi32>
    %31 = arith.cmpi eq, %1, %30 : vector<8x128xi32>
    %32 = arith.andi %28, %31 : vector<8x128xi1>
    %cst_3 = arith.constant 1.000000e+00 : f32
    %33 = vector.broadcast %cst_3 : f32 to vector<8x128xf32>
    %34 = arith.select %32, %33, %26 : vector<8x128xi1>, vector<8x128xf32>
    %c4_i32 = arith.constant 4 : i32
    %35 = vector.broadcast %c4_i32 : i32 to vector<8x128xi32>
    %36 = arith.cmpi eq, %0, %35 : vector<8x128xi32>
    %c4 = arith.constant 4 : index
    %37 = memref.load %arg0[%c4] : memref<8xi32, #tpu.memory_space<smem>>
    %38 = vector.broadcast %37 : i32 to vector<8x128xi32>
    %39 = arith.cmpi eq, %1, %38 : vector<8x128xi32>
    %40 = arith.andi %36, %39 : vector<8x128xi1>
    %cst_4 = arith.constant 1.000000e+00 : f32
    %41 = vector.broadcast %cst_4 : f32 to vector<8x128xf32>
    %42 = arith.select %40, %41, %34 : vector<8x128xi1>, vector<8x128xf32>
    %c5_i32 = arith.constant 5 : i32
    %43 = vector.broadcast %c5_i32 : i32 to vector<8x128xi32>
    %44 = arith.cmpi eq, %0, %43 : vector<8x128xi32>
    %c5 = arith.constant 5 : index
    %45 = memref.load %arg0[%c5] : memref<8xi32, #tpu.memory_space<smem>>
    %46 = vector.broadcast %45 : i32 to vector<8x128xi32>
    %47 = arith.cmpi eq, %1, %46 : vector<8x128xi32>
    %48 = arith.andi %44, %47 : vector<8x128xi1>
    %cst_5 = arith.constant 1.000000e+00 : f32
    %49 = vector.broadcast %cst_5 : f32 to vector<8x128xf32>
    %50 = arith.select %48, %49, %42 : vector<8x128xi1>, vector<8x128xf32>
    %c6_i32 = arith.constant 6 : i32
    %51 = vector.broadcast %c6_i32 : i32 to vector<8x128xi32>
    %52 = arith.cmpi eq, %0, %51 : vector<8x128xi32>
    %c6 = arith.constant 6 : index
    %53 = memref.load %arg0[%c6] : memref<8xi32, #tpu.memory_space<smem>>
    %54 = vector.broadcast %53 : i32 to vector<8x128xi32>
    %55 = arith.cmpi eq, %1, %54 : vector<8x128xi32>
    %56 = arith.andi %52, %55 : vector<8x128xi1>
    %cst_6 = arith.constant 1.000000e+00 : f32
    %57 = vector.broadcast %cst_6 : f32 to vector<8x128xf32>
    %58 = arith.select %56, %57, %50 : vector<8x128xi1>, vector<8x128xf32>
    %c7_i32 = arith.constant 7 : i32
    %59 = vector.broadcast %c7_i32 : i32 to vector<8x128xi32>
    %60 = arith.cmpi eq, %0, %59 : vector<8x128xi32>
    %c7 = arith.constant 7 : index
    %61 = memref.load %arg0[%c7] : memref<8xi32, #tpu.memory_space<smem>>
    %62 = vector.broadcast %61 : i32 to vector<8x128xi32>
    %63 = arith.cmpi eq, %1, %62 : vector<8x128xi32>
    %64 = arith.andi %60, %63 : vector<8x128xi1>
    %cst_7 = arith.constant 1.000000e+00 : f32
    %65 = vector.broadcast %cst_7 : f32 to vector<8x128xf32>
    %66 = arith.select %64, %65, %58 : vector<8x128xi1>, vector<8x128xf32>
    %c0_8 = arith.constant 0 : index
    %c0_9 = arith.constant 0 : index
    %67 = vector.load %arg1[%c0_8, %c0_9] : memref<128x128xf32, #tpu.memory_space<vmem>>, vector<128x128xf32>
    %cst_10 = arith.constant dense<0.000000e+00> : vector<8x128xf32>
    %68 = tpu.matmul %66, %67, %cst_10 {dimension_numbers = #tpu.dot_dimension_numbers<[1], [0], [0], [1], [0, 0, 1, 1], [], []>} : vector<8x128xf32>, vector<128x128xf32>, vector<8x128xf32> -> vector<8x128xf32>
    %c0_11 = arith.constant 0 : index
    %c0_12 = arith.constant 0 : index
    %c0_13 = arith.constant 0 : index
    %69 = vector.load %arg2[%c0_11, %c0_12, %c0_13] : memref<2x8x128xf32, #tpu.memory_space<vmem>>, vector<1x8x128xf32>
    %70 = vector.shape_cast %69 : vector<1x8x128xf32> to vector<8x128xf32>
    %c0_14 = arith.constant 0 : index
    %c0_15 = arith.constant 0 : index
    %c0_16 = arith.constant 0 : index
    %71 = vector.load %arg3[%c0_14, %c0_15, %c0_16] : memref<2x8x128xf32, #tpu.memory_space<vmem>>, vector<1x8x128xf32>
    %72 = vector.shape_cast %71 : vector<1x8x128xf32> to vector<8x128xf32>
    %73 = tpu.concatenate %68, %70 in 1 : vector<8x128xf32>, vector<8x128xf32> -> vector<8x256xf32>
    %c0_17 = arith.constant 0 : index
    %c0_18 = arith.constant 0 : index
    %74 = vector.load %arg4[%c0_17, %c0_18] : memref<256x512xf32, #tpu.memory_space<vmem>>, vector<256x512xf32>
    %cst_19 = arith.constant dense<0.000000e+00> : vector<8x512xf32>
    %75 = tpu.matmul %73, %74, %cst_19 {dimension_numbers = #tpu.dot_dimension_numbers<[1], [0], [0], [1], [0, 0, 1, 1], [], []>} : vector<8x256xf32>, vector<256x512xf32>, vector<8x512xf32> -> vector<8x512xf32>
    %c0_20 = arith.constant 0 : index
    %c0_21 = arith.constant 0 : index
    %76 = vector.load %arg5[%c0_20, %c0_21] : memref<1x512xf32, #tpu.memory_space<vmem>>, vector<1x512xf32>
    %77 = vector.broadcast %76 : vector<1x512xf32> to vector<8x512xf32>
    %78 = arith.addf %75, %77 : vector<8x512xf32>
    %79 = vector.extract_strided_slice %78 {offsets = [0, 0], sizes = [8, 128], strides = [1, 1]} : vector<8x512xf32> to vector<8x128xf32>
    %80 = arith.negf %79 : vector<8x128xf32>
    %81 = math.exp %80 : vector<8x128xf32>
    %cst_22 = arith.constant 1.000000e+00 : f32
    %82 = vector.broadcast %cst_22 : f32 to vector<8x128xf32>
    %83 = arith.addf %82, %81 : vector<8x128xf32>
    %84 = arith.divf %82, %83 : vector<8x128xf32>
    %85 = vector.extract_strided_slice %78 {offsets = [0, 128], sizes = [8, 128], strides = [1, 1]} : vector<8x512xf32> to vector<8x128xf32>
    %86 = arith.negf %85 : vector<8x128xf32>
    %87 = math.exp %86 : vector<8x128xf32>
    %cst_23 = arith.constant 1.000000e+00 : f32
    %88 = vector.broadcast %cst_23 : f32 to vector<8x128xf32>
    %89 = arith.addf %88, %87 : vector<8x128xf32>
    %90 = arith.divf %88, %89 : vector<8x128xf32>
    %91 = vector.extract_strided_slice %78 {offsets = [0, 256], sizes = [8, 128], strides = [1, 1]} : vector<8x512xf32> to vector<8x128xf32>
    %92 = math.tanh %91 : vector<8x128xf32>
    %93 = vector.extract_strided_slice %78 {offsets = [0, 384], sizes = [8, 128], strides = [1, 1]} : vector<8x512xf32> to vector<8x128xf32>
    %94 = arith.negf %93 : vector<8x128xf32>
    %95 = math.exp %94 : vector<8x128xf32>
    %cst_24 = arith.constant 1.000000e+00 : f32
    %96 = vector.broadcast %cst_24 : f32 to vector<8x128xf32>
    %97 = arith.addf %96, %95 : vector<8x128xf32>
    %98 = arith.divf %96, %97 : vector<8x128xf32>
    %99 = arith.mulf %90, %72 : vector<8x128xf32>
    %100 = arith.mulf %84, %92 : vector<8x128xf32>
    %101 = arith.addf %99, %100 : vector<8x128xf32>
    %102 = math.tanh %101 : vector<8x128xf32>
    %103 = arith.mulf %98, %102 : vector<8x128xf32>
    %c0_25 = arith.constant 0 : index
    %c0_26 = arith.constant 0 : index
    %c0_27 = arith.constant 0 : index
    %104 = vector.load %arg11[%c0_25, %c0_26, %c0_27] : memref<2x8x128xf32, #tpu.memory_space<vmem>>, vector<1x8x128xf32>
    %105 = vector.shape_cast %104 : vector<1x8x128xf32> to vector<8x128xf32>
    %106 = vector.shape_cast %103 : vector<8x128xf32> to vector<1x8x128xf32>
    tpu.vector_store %arg11[%c0_25, %c0_26, %c0_27], %106 {strides = array<i32>} : memref<2x8x128xf32, #tpu.memory_space<vmem>>, vector<1x8x128xf32>,
    %c0_28 = arith.constant 0 : index
    %c0_29 = arith.constant 0 : index
    %c0_30 = arith.constant 0 : index
    %107 = vector.load %arg12[%c0_28, %c0_29, %c0_30] : memref<2x8x128xf32, #tpu.memory_space<vmem>>, vector<1x8x128xf32>
    %108 = vector.shape_cast %107 : vector<1x8x128xf32> to vector<8x128xf32>
    %109 = vector.shape_cast %101 : vector<8x128xf32> to vector<1x8x128xf32>
    tpu.vector_store %arg12[%c0_28, %c0_29, %c0_30], %109 {strides = array<i32>} : memref<2x8x128xf32, #tpu.memory_space<vmem>>, vector<1x8x128xf32>,
    %c1_31 = arith.constant 1 : index
    %c0_32 = arith.constant 0 : index
    %c0_33 = arith.constant 0 : index
    %110 = vector.load %arg2[%c1_31, %c0_32, %c0_33] : memref<2x8x128xf32, #tpu.memory_space<vmem>>, vector<1x8x128xf32>
    %111 = vector.shape_cast %110 : vector<1x8x128xf32> to vector<8x128xf32>
    %c1_34 = arith.constant 1 : index
    %c0_35 = arith.constant 0 : index
    %c0_36 = arith.constant 0 : index
    %112 = vector.load %arg3[%c1_34, %c0_35, %c0_36] : memref<2x8x128xf32, #tpu.memory_space<vmem>>, vector<1x8x128xf32>
    %113 = vector.shape_cast %112 : vector<1x8x128xf32> to vector<8x128xf32>
    %114 = tpu.concatenate %103, %111 in 1 : vector<8x128xf32>, vector<8x128xf32> -> vector<8x256xf32>
    %c0_37 = arith.constant 0 : index
    %c0_38 = arith.constant 0 : index
    %115 = vector.load %arg6[%c0_37, %c0_38] : memref<256x512xf32, #tpu.memory_space<vmem>>, vector<256x512xf32>
    %cst_39 = arith.constant dense<0.000000e+00> : vector<8x512xf32>
    %116 = tpu.matmul %114, %115, %cst_39 {dimension_numbers = #tpu.dot_dimension_numbers<[1], [0], [0], [1], [0, 0, 1, 1], [], []>} : vector<8x256xf32>, vector<256x512xf32>, vector<8x512xf32> -> vector<8x512xf32>
    %c0_40 = arith.constant 0 : index
    %c0_41 = arith.constant 0 : index
    %117 = vector.load %arg7[%c0_40, %c0_41] : memref<1x512xf32, #tpu.memory_space<vmem>>, vector<1x512xf32>
    %118 = vector.broadcast %117 : vector<1x512xf32> to vector<8x512xf32>
    %119 = arith.addf %116, %118 : vector<8x512xf32>
    %120 = vector.extract_strided_slice %119 {offsets = [0, 0], sizes = [8, 128], strides = [1, 1]} : vector<8x512xf32> to vector<8x128xf32>
    %121 = arith.negf %120 : vector<8x128xf32>
    %122 = math.exp %121 : vector<8x128xf32>
    %cst_42 = arith.constant 1.000000e+00 : f32
    %123 = vector.broadcast %cst_42 : f32 to vector<8x128xf32>
    %124 = arith.addf %123, %122 : vector<8x128xf32>
    %125 = arith.divf %123, %124 : vector<8x128xf32>
    %126 = vector.extract_strided_slice %119 {offsets = [0, 128], sizes = [8, 128], strides = [1, 1]} : vector<8x512xf32> to vector<8x128xf32>
    %127 = arith.negf %126 : vector<8x128xf32>
    %128 = math.exp %127 : vector<8x128xf32>
    %cst_43 = arith.constant 1.000000e+00 : f32
    %129 = vector.broadcast %cst_43 : f32 to vector<8x128xf32>
    %130 = arith.addf %129, %128 : vector<8x128xf32>
    %131 = arith.divf %129, %130 : vector<8x128xf32>
    %132 = vector.extract_strided_slice %119 {offsets = [0, 256], sizes = [8, 128], strides = [1, 1]} : vector<8x512xf32> to vector<8x128xf32>
    %133 = math.tanh %132 : vector<8x128xf32>
    %134 = vector.extract_strided_slice %119 {offsets = [0, 384], sizes = [8, 128], strides = [1, 1]} : vector<8x512xf32> to vector<8x128xf32>
    %135 = arith.negf %134 : vector<8x128xf32>
    %136 = math.exp %135 : vector<8x128xf32>
    %cst_44 = arith.constant 1.000000e+00 : f32
    %137 = vector.broadcast %cst_44 : f32 to vector<8x128xf32>
    %138 = arith.addf %137, %136 : vector<8x128xf32>
    %139 = arith.divf %137, %138 : vector<8x128xf32>
    %140 = arith.mulf %131, %113 : vector<8x128xf32>
    %141 = arith.mulf %125, %133 : vector<8x128xf32>
    %142 = arith.addf %140, %141 : vector<8x128xf32>
    %143 = math.tanh %142 : vector<8x128xf32>
    %144 = arith.mulf %139, %143 : vector<8x128xf32>
    %c1_45 = arith.constant 1 : index
    %c0_46 = arith.constant 0 : index
    %c0_47 = arith.constant 0 : index
    %145 = vector.load %arg11[%c1_45, %c0_46, %c0_47] : memref<2x8x128xf32, #tpu.memory_space<vmem>>, vector<1x8x128xf32>
    %146 = vector.shape_cast %145 : vector<1x8x128xf32> to vector<8x128xf32>
    %147 = vector.shape_cast %144 : vector<8x128xf32> to vector<1x8x128xf32>
    tpu.vector_store %arg11[%c1_45, %c0_46, %c0_47], %147 {strides = array<i32>} : memref<2x8x128xf32, #tpu.memory_space<vmem>>, vector<1x8x128xf32>,
    %c1_48 = arith.constant 1 : index
    %c0_49 = arith.constant 0 : index
    %c0_50 = arith.constant 0 : index
    %148 = vector.load %arg12[%c1_48, %c0_49, %c0_50] : memref<2x8x128xf32, #tpu.memory_space<vmem>>, vector<1x8x128xf32>
    %149 = vector.shape_cast %148 : vector<1x8x128xf32> to vector<8x128xf32>
    %150 = vector.shape_cast %142 : vector<8x128xf32> to vector<1x8x128xf32>
    tpu.vector_store %arg12[%c1_48, %c0_49, %c0_50], %150 {strides = array<i32>} : memref<2x8x128xf32, #tpu.memory_space<vmem>>, vector<1x8x128xf32>,
    %c0_51 = arith.constant 0 : index
    %c0_52 = arith.constant 0 : index
    %151 = vector.load %arg8[%c0_51, %c0_52] : memref<128x128xf32, #tpu.memory_space<vmem>>, vector<128x128xf32>
    %cst_53 = arith.constant dense<0.000000e+00> : vector<8x128xf32>
    %152 = tpu.matmul %144, %151, %cst_53 {dimension_numbers = #tpu.dot_dimension_numbers<[1], [0], [0], [1], [0, 0, 1, 1], [], []>} : vector<8x128xf32>, vector<128x128xf32>, vector<8x128xf32> -> vector<8x128xf32>
    %c0_54 = arith.constant 0 : index
    %c0_55 = arith.constant 0 : index
    %153 = vector.load %arg9[%c0_54, %c0_55] : memref<1x128xf32, #tpu.memory_space<vmem>>, vector<1x128xf32>
    %154 = vector.broadcast %153 : vector<1x128xf32> to vector<8x128xf32>
    %155 = arith.addf %152, %154 : vector<8x128xf32>
    %c0_56 = arith.constant 0 : index
    %c0_57 = arith.constant 0 : index
    %156 = vector.load %arg10[%c0_56, %c0_57] : memref<8x128xf32, #tpu.memory_space<vmem>>, vector<8x128xf32>
    tpu.vector_store %arg10[%c0_56, %c0_57], %155 {strides = array<i32>} : memref<8x128xf32, #tpu.memory_space<vmem>>, vector<8x128xf32>,
    return
  }
}

</mosaic_0001>

<llo_original>
// kernel: decoder_forward.1
$region0: #{decoder_forward.1}
  #allocation0 [shape = 'u32[]', space=smem, size = 0x4, offset = 0x4, fixed_abs, tag = 'smem constant byte address 0x4 - core index']
  #allocation1 [shape = 'u32[144,128]{1,0:T(1,128)}', space=vmem, size = 0x12000, scoped, tag = 'internal scratch']
  %s0 = inlined_call_operand.vmem [shape: s32[8], index: 0, kind: input, shape index: {}]
  %s1 = inlined_call_operand.hbm [shape: f32[128,128], index: 1, kind: input, shape index: {}]
  %s2 = inlined_call_operand.vmem [shape: f32[2,8,128], index: 2, kind: input, shape index: {}]
  %s3 = inlined_call_operand.vmem [shape: f32[2,8,128], index: 3, kind: input, shape index: {}]
  %s4 = inlined_call_operand.hbm [shape: f32[256,512], index: 4, kind: input, shape index: {}]
  %s5 = inlined_call_operand.vmem [shape: f32[1,512], index: 5, kind: input, shape index: {}]
  %s6 = inlined_call_operand.hbm [shape: f32[256,512], index: 6, kind: input, shape index: {}]
  %s7 = inlined_call_operand.vmem [shape: f32[1,512], index: 7, kind: input, shape index: {}]
  %s8 = inlined_call_operand.hbm [shape: f32[128,128], index: 8, kind: input, shape index: {}]
  %s9 = inlined_call_operand.vmem [shape: f32[1,128], index: 9, kind: input, shape index: {}]
  %s10 = inlined_call_operand.vmem [shape: f32[8,128], index: 10, kind: output, shape index: {0}]
  %s11 = inlined_call_operand.vmem [shape: f32[2,8,128], index: 11, kind: output, shape index: {1}]
  %s12 = inlined_call_operand.vmem [shape: f32[2,8,128], index: 12, kind: output, shape index: {2}]
  %13 = xla_tuple %s10, %s11, %s12
  %s14 = sld [smem:[#allocation0]]
  $region86: #{decoder_forward.1} parent=0
    _
  %s16 = ssub.s32 1, %s14
  %s17 = scalar_select 0, %s16, %s14
  $region1: #{decoder_forward.1} parent=0
    #allocation2 [shape = 'u8[512]{0}', space=smem, size = 0x200, scoped, tag = 'input window, operand 0, single buffered']
    #allocation3 [shape = 's32[1]{0}', space=sflag, size = 0x4, scoped, tag = 'scoped memory for decoder_forward.1']
    #allocation4 [shape = 's32[1]{0}', space=sflag, size = 0x4, scoped, tag = 'scoped memory for decoder_forward.1']
    #allocation5 [shape = 'u8[65536]{0}', space=vmem, size = 0x10000, scoped, tag = 'input window, operand 1, single buffered']
    #allocation6 [shape = 'u8[524288]{0}', space=vmem, size = 0x80000, scoped, tag = 'input window, operand 4, single buffered']
    #allocation7 [shape = 's32[1]{0}', space=sflag, size = 0x4, scoped, tag = 'scoped memory for decoder_forward.1']
    #allocation8 [shape = 'u8[524288]{0}', space=vmem, size = 0x80000, scoped, tag = 'input window, operand 6, single buffered']
    #allocation9 [shape = 'u8[65536]{0}', space=vmem, size = 0x10000, scoped, tag = 'input window, operand 8, single buffered']
    #allocation10 [shape = 's32[1]{0}', space=sflag, size = 0x4, scoped, tag = 'scoped memory for decoder_forward.1']
    %18 = vsyncpa [#allocation4], 0
    %19 = vsyncpa [#allocation3], 0
    %20 = vsyncpa [#allocation7], 0
    %21 = vsyncpa [#allocation10], 0
    // Predicated region
    $region2: #{decoder_forward.1} parent=1 // pred_check
      _
    $region3: #{decoder_forward.1} parent=1 // pred_check_branch
      %23 = sbr.rel (0) target = $region5
    $region4: #{decoder_forward.1} parent=1 // pred_region
      %s25 = ssub.s32 16, 16
      %26 = vsyncadd [#allocation4], %s25
      %s28 = sshll.u32 %s0, 4
      %s29 = int_to_ptr.vmem [resolvable:$true] %s28
      %31 = dma.vmem_to_smem %s29, 16, [#allocation2], [#allocation4]
    $region5: #{decoder_forward.1} parent=1 // pred_fallthru
      _
    // Predicated region
    $region6: #{decoder_forward.1} parent=1 // pred_check
      _
    $region7: #{decoder_forward.1} parent=1 // pred_check_branch
      %33 = sbr.rel (0) target = $region9
    $region8: #{decoder_forward.1} parent=1 // pred_region
      %s35 = ssub.s32 2048, 2048
      %36 = vsyncadd [#allocation3], %s35
      %s37 = sshll.u32 [#allocation5], 4
      %s38 = int_to_ptr.vmem [resolvable:$true] %s37
      %43 = dma.hbm_to_vmem [thread:$0]  %s1, 2048, %s38, [#allocation3], 128, 128, 8
    $region9: #{decoder_forward.1} parent=1 // pred_fallthru
      _
    // Predicated region
    $region10: #{decoder_forward.1} parent=1 // pred_check
      _
    $region11: #{decoder_forward.1} parent=1 // pred_check_branch
      %45 = sbr.rel (0) target = $region13
    $region12: #{decoder_forward.1} parent=1 // pred_region
      _
    $region13: #{decoder_forward.1} parent=1 // pred_fallthru
      _
    // Predicated region
    $region14: #{decoder_forward.1} parent=1 // pred_check
      _
    $region15: #{decoder_forward.1} parent=1 // pred_check_branch
      %47 = sbr.rel (0) target = $region17
    $region16: #{decoder_forward.1} parent=1 // pred_region
      _
    $region17: #{decoder_forward.1} parent=1 // pred_fallthru
      _
    // Predicated region
    $region18: #{decoder_forward.1} parent=1 // pred_check
      _
    $region19: #{decoder_forward.1} parent=1 // pred_check_branch
      %49 = sbr.rel (0) target = $region21
    $region20: #{decoder_forward.1} parent=1 // pred_region
      %s51 = ssub.s32 16384, 16384
      %52 = vsyncadd [#allocation7], %s51
      %s53 = sshll.u32 [#allocation6], 4
      %s54 = int_to_ptr.vmem [resolvable:$true] %s53
      %59 = dma.hbm_to_vmem [thread:$0]  %s4, 16384, %s54, [#allocation7], 512, 512, 32
    $region21: #{decoder_forward.1} parent=1 // pred_fallthru
      _
    // Predicated region
    $region22: #{decoder_forward.1} parent=1 // pred_check
      _
    $region23: #{decoder_forward.1} parent=1 // pred_check_branch
      %61 = sbr.rel (0) target = $region25
    $region24: #{decoder_forward.1} parent=1 // pred_region
      _
    $region25: #{decoder_forward.1} parent=1 // pred_fallthru
      _
    // Predicated region
    $region26: #{decoder_forward.1} parent=1 // pred_check
      _
    $region27: #{decoder_forward.1} parent=1 // pred_check_branch
      %63 = sbr.rel (0) target = $region29
    $region28: #{decoder_forward.1} parent=1 // pred_region
      %s65 = ssub.s32 16384, 16384
      %66 = vsyncadd [#allocation7], %s65
      %s67 = sshll.u32 [#allocation8], 4
      %s68 = int_to_ptr.vmem [resolvable:$true] %s67
      %73 = dma.hbm_to_vmem [thread:$0]  %s6, 16384, %s68, [#allocation7], 512, 512, 32
    $region29: #{decoder_forward.1} parent=1 // pred_fallthru
      _
    // Predicated region
    $region30: #{decoder_forward.1} parent=1 // pred_check
      _
    $region31: #{decoder_forward.1} parent=1 // pred_check_branch
      %75 = sbr.rel (0) target = $region33
    $region32: #{decoder_forward.1} parent=1 // pred_region
      _
    $region33: #{decoder_forward.1} parent=1 // pred_fallthru
      _
    // Predicated region
    $region34: #{decoder_forward.1} parent=1 // pred_check
      _
    $region35: #{decoder_forward.1} parent=1 // pred_check_branch
      %77 = sbr.rel (0) target = $region37
    $region36: #{decoder_forward.1} parent=1 // pred_region
      %s79 = ssub.s32 2048, 2048
      %80 = vsyncadd [#allocation10], %s79
      %s81 = sshll.u32 [#allocation9], 4
      %s82 = int_to_ptr.vmem [resolvable:$true] %s81
      %87 = dma.hbm_to_vmem [thread:$0]  %s8, 2048, %s82, [#allocation10], 128, 128, 8
    $region37: #{decoder_forward.1} parent=1 // pred_fallthru
      _
    // Predicated region
    $region38: #{decoder_forward.1} parent=1 // pred_check
      _
    $region39: #{decoder_forward.1} parent=1 // pred_check_branch
      %89 = sbr.rel (0) target = $region41
    $region40: #{decoder_forward.1} parent=1 // pred_region
      _
    $region41: #{decoder_forward.1} parent=1 // pred_fallthru
      _
    // Predicated region
    $region42: #{decoder_forward.1} parent=1 // pred_check
      _
    $region43: #{decoder_forward.1} parent=1 // pred_check_branch
      %91 = sbr.rel (0) target = $region45
    $region44: #{decoder_forward.1} parent=1 // pred_region
      %92 = dma.done [#allocation4], 16
    $region45: #{decoder_forward.1} parent=1 // pred_fallthru
      _
    // Predicated region
    $region46: #{decoder_forward.1} parent=1 // pred_check
      _
    $region47: #{decoder_forward.1} parent=1 // pred_check_branch
      %94 = sbr.rel (0) target = $region49
    $region48: #{decoder_forward.1} parent=1 // pred_region
      %95 = dma.done [#allocation3], 2048
    $region49: #{decoder_forward.1} parent=1 // pred_fallthru
      _
    // Predicated region
    $region50: #{decoder_forward.1} parent=1 // pred_check
      _
    $region51: #{decoder_forward.1} parent=1 // pred_check_branch
      %97 = sbr.rel (0) target = $region53
    $region52: #{decoder_forward.1} parent=1 // pred_region
      %98 = dma.done [#allocation7], 16384
    $region53: #{decoder_forward.1} parent=1 // pred_fallthru
      _
    // Predicated region
    $region54: #{decoder_forward.1} parent=1 // pred_check
      _
    $region55: #{decoder_forward.1} parent=1 // pred_check_branch
      %100 = sbr.rel (0) target = $region57
    $region56: #{decoder_forward.1} parent=1 // pred_region
      %101 = dma.done [#allocation7], 16384
    $region57: #{decoder_forward.1} parent=1 // pred_fallthru
      _
    // Predicated region
    $region58: #{decoder_forward.1} parent=1 // pred_check
      _
    $region59: #{decoder_forward.1} parent=1 // pred_check_branch
      %103 = sbr.rel (0) target = $region61
    $region60: #{decoder_forward.1} parent=1 // pred_region
      %104 = dma.done [#allocation10], 2048
    $region61: #{decoder_forward.1} parent=1 // pred_fallthru
      _
    %105 = sfence
    %v106 = vlaneseq
    %v107 = vshrl.u32 %v106, 7
    %v108 = vlaneseq
    %v109 = vand.u32 %v108, 127
    %vm110 = vcmp.eq.s32.totalorder %v107, 0
    %s111 = sld [smem:[#allocation2]]
    %v112 = vstv %s111
    %vm113 = vcmp.eq.s32.totalorder %v109, %v112
    %vm114 = vmand %vm110, %vm113
    %v115 = vsel %vm114, 1.0, 0.0
    %vm116 = vcmp.eq.s32.totalorder %v107, 1
    %s117 = sld [smem:[#allocation2 + $0x1]]
    %v118 = vstv %s117
    %vm119 = vcmp.eq.s32.totalorder %v109, %v118
    %vm120 = vmand %vm116, %vm119
    %v121 = vsel %vm120, 1.0, %v115
    %vm122 = vcmp.eq.s32.totalorder %v107, 2
    %s123 = sld [smem:[#allocation2 + $0x2]]
    %v124 = vstv %s123
    %vm125 = vcmp.eq.s32.totalorder %v109, %v124
    %vm126 = vmand %vm122, %vm125
    %v127 = vsel %vm126, 1.0, %v121
    %vm128 = vcmp.eq.s32.totalorder %v107, 3
    %s129 = sld [smem:[#allocation2 + $0x3]]
    %v130 = vstv %s129
    %vm131 = vcmp.eq.s32.totalorder %v109, %v130
    %vm132 = vmand %vm128, %vm131
    %v133 = vsel %vm132, 1.0, %v127
    %vm134 = vcmp.eq.s32.totalorder %v107, 4
    %s135 = sld [smem:[#allocation2 + $0x4]]
    %v136 = vstv %s135
    %vm137 = vcmp.eq.s32.totalorder %v109, %v136
    %vm138 = vmand %vm134, %vm137
    %v139 = vsel %vm138, 1.0, %v133
    %vm140 = vcmp.eq.s32.totalorder %v107, 5
    %s141 = sld [smem:[#allocation2 + $0x5]]
    %v142 = vstv %s141
    %vm143 = vcmp.eq.s32.totalorder %v109, %v142
    %vm144 = vmand %vm140, %vm143
    %v145 = vsel %vm144, 1.0, %v139
    %vm146 = vcmp.eq.s32.totalorder %v107, 6
    %s147 = sld [smem:[#allocation2 + $0x6]]
    %v148 = vstv %s147
    %vm149 = vcmp.eq.s32.totalorder %v109, %v148
    %vm150 = vmand %vm146, %vm149
    %v151 = vsel %vm150, 1.0, %v145
    %vm152 = vcmp.eq.s32.totalorder %v107, 7
    %s153 = sld [smem:[#allocation2 + $0x7]]
    %v154 = vstv %s153
    %vm155 = vcmp.eq.s32.totalorder %v109, %v154
    %vm156 = vmand %vm152, %vm155
    %v157 = vsel %vm156, 1.0, %v151
    %v158 = vld [vmem:[#allocation5] sm:$0xff]
    %v159 = vld [vmem:[#allocation5 + $0x8] sm:$0xff]
    %v160 = vld [vmem:[#allocation5 + $0x10] sm:$0xff]
    %v161 = vld [vmem:[#allocation5 + $0x18] sm:$0xff]
    %v162 = vld [vmem:[#allocation5 + $0x20] sm:$0xff]
    %v163 = vld [vmem:[#allocation5 + $0x28] sm:$0xff]
    %v164 = vld [vmem:[#allocation5 + $0x30] sm:$0xff]
    %v165 = vld [vmem:[#allocation5 + $0x38] sm:$0xff]
    %v166 = vld [vmem:[#allocation5 + $0x40] sm:$0xff]
    %v167 = vld [vmem:[#allocation5 + $0x48] sm:$0xff]
    %v168 = vld [vmem:[#allocation5 + $0x50] sm:$0xff]
    %v169 = vld [vmem:[#allocation5 + $0x58] sm:$0xff]
    %v170 = vld [vmem:[#allocation5 + $0x60] sm:$0xff]
    %v171 = vld [vmem:[#allocation5 + $0x68] sm:$0xff]
    %v172 = vld [vmem:[#allocation5 + $0x70] sm:$0xff]
    %v173 = vld [vmem:[#allocation5 + $0x78] sm:$0xff]
    %174 = vmatprep.subr.mxu0 0.0
    %175 = vmatpush1.msra.mxu0 %v158
    %176 = vmatprep.subr.mxu0 0.0
    %177 = vmatpush1.msra.mxu0 %v159
    %178 = vmatprep.subr.mxu0 0.0
    %179 = vmatpush1.msra.mxu0 %v160
    %180 = vmatprep.subr.mxu0 0.0
    %181 = vmatpush1.msra.mxu0 %v161
    %182 = vmatprep.subr.mxu0 0.0
    %183 = vmatpush1.msra.mxu0 %v162
    %184 = vmatprep.subr.mxu0 0.0
    %185 = vmatpush1.msra.mxu0 %v163
    %186 = vmatprep.subr.mxu0 0.0
    %187 = vmatpush1.msra.mxu0 %v164
    %188 = vmatprep.subr.mxu0 0.0
    %189 = vmatpush1.msra.mxu0 %v165
    %190 = vmatprep.subr.mxu0 0.0
    %191 = vmatpush1.msra.mxu0 %v166
    %192 = vmatprep.subr.mxu0 0.0
    %193 = vmatpush1.msra.mxu0 %v167
    %194 = vmatprep.subr.mxu0 0.0
    %195 = vmatpush1.msra.mxu0 %v168
    %196 = vmatprep.subr.mxu0 0.0
    %197 = vmatpush1.msra.mxu0 %v169
    %198 = vmatprep.subr.mxu0 0.0
    %199 = vmatpush1.msra.mxu0 %v170
    %200 = vmatprep.subr.mxu0 0.0
    %201 = vmatpush1.msra.mxu0 %v171
    %202 = vmatprep.subr.mxu0 0.0
    %203 = vmatpush1.msra.mxu0 %v172
    %204 = vmatprep.subr.mxu0 0.0
    %205 = vmatpush1.msra.mxu0 %v173
    %206 = vmatprep.subr.mxu0 0.0
    %207 = vmatpush1.msra.mxu0 0.0
    %208 = vmatprep.subr.mxu0 0.0
    %209 = vmatpush1.msra.mxu0 0.0
    %210 = vmatprep.subr.mxu0 0.0
    %211 = vmatpush1.msra.mxu0 0.0
    %212 = vmatprep.subr.mxu0 0.0
    %213 = vmatpush1.msra.mxu0 0.0
    %214 = vmatprep.subr.mxu0 0.0
    %215 = vmatpush1.msra.mxu0 0.0
    %216 = vmatprep.subr.mxu0 0.0
    %217 = vmatpush1.msra.mxu0 0.0
    %218 = vmatprep.subr.mxu0 0.0
    %219 = vmatpush1.msra.mxu0 0.0
    %220 = vmatprep.subr.mxu0 0.0
    %221 = vmatpush1.msra.mxu0 0.0
    %222 = vmatprep.subr.mxu0 0.0
    %223 = vmatpush1.msra.mxu0 0.0
    %224 = vmatprep.subr.mxu0 0.0
    %225 = vmatpush1.msra.mxu0 0.0
    %226 = vmatprep.subr.mxu0 0.0
    %227 = vmatpush1.msra.mxu0 0.0
    %228 = vmatprep.subr.mxu0 0.0
    %229 = vmatpush1.msra.mxu0 0.0
    %230 = vmatprep.subr.mxu0 0.0
    %231 = vmatpush1.msra.mxu0 0.0
    %232 = vmatprep.subr.mxu0 0.0
    %233 = vmatpush1.msra.mxu0 0.0
    %234 = vmatprep.subr.mxu0 0.0
    %235 = vmatpush1.msra.mxu0 0.0
    %236 = vmatprep.subr.mxu0 0.0
    %237 = vmatpush1.msra.mxu0 0.0
    %238 = vmatprep.mubr.f32.mxu0 0.0
    %239 = vmatmul.mubr.f32.gmra.mrb[0].mxu0 %v157
    %v240 = vpop.f32.mrb[0].mxu0
    %v241 = vadd.f32 0.0, %v240
    %v242 = vpop.f32.mrb[0].mxu0
    %243 = vdwg.mxu0
    %v244 = vld [vmem:[%s2] sm:$0xff]
    %v245 = vld [vmem:[%s3] sm:$0xff]
    %v246 = vld [vmem:[#allocation6] sm:$0xff]
    %v247 = vld [vmem:[#allocation6 + $0x8] sm:$0xff]
    %v248 = vld [vmem:[#allocation6 + $0x10] sm:$0xff]
    %v249 = vld [vmem:[#allocation6 + $0x18] sm:$0xff]
    %v250 = vld [vmem:[#allocation6 + $0x20] sm:$0xff]
    %v251 = vld [vmem:[#allocation6 + $0x28] sm:$0xff]
    %v252 = vld [vmem:[#allocation6 + $0x30] sm:$0xff]
    %v253 = vld [vmem:[#allocation6 + $0x38] sm:$0xff]
    %v254 = vld [vmem:[#allocation6 + $0x40] sm:$0xff]
    %v255 = vld [vmem:[#allocation6 + $0x48] sm:$0xff]
    %v256 = vld [vmem:[#allocation6 + $0x50] sm:$0xff]
    %v257 = vld [vmem:[#allocation6 + $0x58] sm:$0xff]
    %v258 = vld [vmem:[#allocation6 + $0x60] sm:$0xff]
    %v259 = vld [vmem:[#allocation6 + $0x68] sm:$0xff]
    %v260 = vld [vmem:[#allocation6 + $0x70] sm:$0xff]
    %v261 = vld [vmem:[#allocation6 + $0x78] sm:$0xff]
    %v262 = vld [vmem:[#allocation6 + $0x80] sm:$0xff]
    %v263 = vld [vmem:[#allocation6 + $0x88] sm:$0xff]
    %v264 = vld [vmem:[#allocation6 + $0x90] sm:$0xff]
    %v265 = vld [vmem:[#allocation6 + $0x98] sm:$0xff]
    %v266 = vld [vmem:[#allocation6 + $0xa0] sm:$0xff]
    %v267 = vld [vmem:[#allocation6 + $0xa8] sm:$0xff]
    %v268 = vld [vmem:[#allocation6 + $0xb0] sm:$0xff]
    %v269 = vld [vmem:[#allocation6 + $0xb8] sm:$0xff]
    %v270 = vld [vmem:[#allocation6 + $0xc0] sm:$0xff]
    %v271 = vld [vmem:[#allocation6 + $0xc8] sm:$0xff]
    %v272 = vld [vmem:[#allocation6 + $0xd0] sm:$0xff]
    %v273 = vld [vmem:[#allocation6 + $0xd8] sm:$0xff]
    %v274 = vld [vmem:[#allocation6 + $0xe0] sm:$0xff]
    %v275 = vld [vmem:[#allocation6 + $0xe8] sm:$0xff]
    %v276 = vld [vmem:[#allocation6 + $0xf0] sm:$0xff]
    %v277 = vld [vmem:[#allocation6 + $0xf8] sm:$0xff]
    %v278 = vld [vmem:[#allocation6 + $0x100] sm:$0xff]
    %v279 = vld [vmem:[#allocation6 + $0x108] sm:$0xff]
    %v280 = vld [vmem:[#allocation6 + $0x110] sm:$0xff]
    %v281 = vld [vmem:[#allocation6 + $0x118] sm:$0xff]
    %v282 = vld [vmem:[#allocation6 + $0x120] sm:$0xff]
    %v283 = vld [vmem:[#allocation6 + $0x128] sm:$0xff]
    %v284 = vld [vmem:[#allocation6 + $0x130] sm:$0xff]
    %v285 = vld [vmem:[#allocation6 + $0x138] sm:$0xff]
    %v286 = vld [vmem:[#allocation6 + $0x140] sm:$0xff]
    %v287 = vld [vmem:[#allocation6 + $0x148] sm:$0xff]
    %v288 = vld [vmem:[#allocation6 + $0x150] sm:$0xff]
    %v289 = vld [vmem:[#allocation6 + $0x158] sm:$0xff]
    %v290 = vld [vmem:[#allocation6 + $0x160] sm:$0xff]
    %v291 = vld [vmem:[#allocation6 + $0x168] sm:$0xff]
    %v292 = vld [vmem:[#allocation6 + $0x170] sm:$0xff]
    %v293 = vld [vmem:[#allocation6 + $0x178] sm:$0xff]
    %v294 = vld [vmem:[#allocation6 + $0x180] sm:$0xff]
    %v295 = vld [vmem:[#allocation6 + $0x188] sm:$0xff]
    %v296 = vld [vmem:[#allocation6 + $0x190] sm:$0xff]
    %v297 = vld [vmem:[#allocation6 + $0x198] sm:$0xff]
    %v298 = vld [vmem:[#allocation6 + $0x1a0] sm:$0xff]
    %v299 = vld [vmem:[#allocation6 + $0x1a8] sm:$0xff]
    %v300 = vld [vmem:[#allocation6 + $0x1b0] sm:$0xff]
    %v301 = vld [vmem:[#allocation6 + $0x1b8] sm:$0xff]
    %v302 = vld [vmem:[#allocation6 + $0x1c0] sm:$0xff]
    %v303 = vld [vmem:[#allocation6 + $0x1c8] sm:$0xff]
    %v304 = vld [vmem:[#allocation6 + $0x1d0] sm:$0xff]
    %v305 = vld [vmem:[#allocation6 + $0x1d8] sm:$0xff]
    %v306 = vld [vmem:[#allocation6 + $0x1e0] sm:$0xff]
    %v307 = vld [vmem:[#allocation6 + $0x1e8] sm:$0xff]
    %v308 = vld [vmem:[#allocation6 + $0x1f0] sm:$0xff]
    %v309 = vld [vmem:[#allocation6 + $0x1f8] sm:$0xff]
    %v310 = vld [vmem:[#allocation6 + $0x200] sm:$0xff]
    %v311 = vld [vmem:[#allocation6 + $0x208] sm:$0xff]
    %v312 = vld [vmem:[#allocation6 + $0x210] sm:$0xff]
    %v313 = vld [vmem:[#allocation6 + $0x218] sm:$0xff]
    %v314 = vld [vmem:[#allocation6 + $0x220] sm:$0xff]
    %v315 = vld [vmem:[#allocation6 + $0x228] sm:$0xff]
    %v316 = vld [vmem:[#allocation6 + $0x230] sm:$0xff]
    %v317 = vld [vmem:[#allocation6 + $0x238] sm:$0xff]
    %v318 = vld [vmem:[#allocation6 + $0x240] sm:$0xff]
    %v319 = vld [vmem:[#allocation6 + $0x248] sm:$0xff]
    %v320 = vld [vmem:[#allocation6 + $0x250] sm:$0xff]
    %v321 = vld [vmem:[#allocation6 + $0x258] sm:$0xff]
    %v322 = vld [vmem:[#allocation6 + $0x260] sm:$0xff]
    %v323 = vld [vmem:[#allocation6 + $0x268] sm:$0xff]
    %v324 = vld [vmem:[#allocation6 + $0x270] sm:$0xff]
    %v325 = vld [vmem:[#allocation6 + $0x278] sm:$0xff]
    %v326 = vld [vmem:[#allocation6 + $0x280] sm:$0xff]
    %v327 = vld [vmem:[#allocation6 + $0x288] sm:$0xff]
    %v328 = vld [vmem:[#allocation6 + $0x290] sm:$0xff]
    %v329 = vld [vmem:[#allocation6 + $0x298] sm:$0xff]
    %v330 = vld [vmem:[#allocation6 + $0x2a0] sm:$0xff]
    %v331 = vld [vmem:[#allocation6 + $0x2a8] sm:$0xff]
    %v332 = vld [vmem:[#allocation6 + $0x2b0] sm:$0xff]
    %v333 = vld [vmem:[#allocation6 + $0x2b8] sm:$0xff]
    %v334 = vld [vmem:[#allocation6 + $0x2c0] sm:$0xff]
    %v335 = vld [vmem:[#allocation6 + $0x2c8] sm:$0xff]
    %v336 = vld [vmem:[#allocation6 + $0x2d0] sm:$0xff]
    %v337 = vld [vmem:[#allocation6 + $0x2d8] sm:$0xff]
    %v338 = vld [vmem:[#allocation6 + $0x2e0] sm:$0xff]
    %v339 = vld [vmem:[#allocation6 + $0x2e8] sm:$0xff]
    %v340 = vld [vmem:[#allocation6 + $0x2f0] sm:$0xff]
    %v341 = vld [vmem:[#allocation6 + $0x2f8] sm:$0xff]
    %v342 = vld [vmem:[#allocation6 + $0x300] sm:$0xff]
    %v343 = vld [vmem:[#allocation6 + $0x308] sm:$0xff]
    %v344 = vld [vmem:[#allocation6 + $0x310] sm:$0xff]
    %v345 = vld [vmem:[#allocation6 + $0x318] sm:$0xff]
    %v346 = vld [vmem:[#allocation6 + $0x320] sm:$0xff]
    %v347 = vld [vmem:[#allocation6 + $0x328] sm:$0xff]
    %v348 = vld [vmem:[#allocation6 + $0x330] sm:$0xff]
    %v349 = vld [vmem:[#allocation6 + $0x338] sm:$0xff]
    %v350 = vld [vmem:[#allocation6 + $0x340] sm:$0xff]
    %v351 = vld [vmem:[#allocation6 + $0x348] sm:$0xff]
    %v352 = vld [vmem:[#allocation6 + $0x350] sm:$0xff]
    %v353 = vld [vmem:[#allocation6 + $0x358] sm:$0xff]
    %v354 = vld [vmem:[#allocation6 + $0x360] sm:$0xff]
    %v355 = vld [vmem:[#allocation6 + $0x368] sm:$0xff]
    %v356 = vld [vmem:[#allocation6 + $0x370] sm:$0xff]
    %v357 = vld [vmem:[#allocation6 + $0x378] sm:$0xff]
    %v358 = vld [vmem:[#allocation6 + $0x380] sm:$0xff]
    %v359 = vld [vmem:[#allocation6 + $0x388] sm:$0xff]
    %v360 = vld [vmem:[#allocation6 + $0x390] sm:$0xff]
    %v361 = vld [vmem:[#allocation6 + $0x398] sm:$0xff]
    %v362 = vld [vmem:[#allocation6 + $0x3a0] sm:$0xff]
    %v363 = vld [vmem:[#allocation6 + $0x3a8] sm:$0xff]
    %v364 = vld [vmem:[#allocation6 + $0x3b0] sm:$0xff]
    %v365 = vld [vmem:[#allocation6 + $0x3b8] sm:$0xff]
    %v366 = vld [vmem:[#allocation6 + $0x3c0] sm:$0xff]
    %v367 = vld [vmem:[#allocation6 + $0x3c8] sm:$0xff]
    %v368 = vld [vmem:[#allocation6 + $0x3d0] sm:$0xff]
    %v369 = vld [vmem:[#allocation6 + $0x3d8] sm:$0xff]
    %v370 = vld [vmem:[#allocation6 + $0x3e0] sm:$0xff]
    %v371 = vld [vmem:[#allocation6 + $0x3e8] sm:$0xff]
    %v372 = vld [vmem:[#allocation6 + $0x3f0] sm:$0xff]
    %v373 = vld [vmem:[#allocation6 + $0x3f8] sm:$0xff]
    %v374 = vld [vmem:[%s5] sm:$0xf]
    %v376 = vlaneseq
    %v377 = vshrl.u32 %v376, 7
    %v378 = vsub.s32 0, %v377
    %v379 = vrot.slane %v374, %v378
    %v380 = vlaneseq
    %v381 = vshrl.u32 %v380, 7
    %v382 = vsub.s32 1, %v381
    %v383 = vrot.slane %v374, %v382
    %v384 = vlaneseq
    %v385 = vshrl.u32 %v384, 7
    %v386 = vsub.s32 2, %v385
    %v387 = vrot.slane %v374, %v386
    %v388 = vlaneseq
    %v389 = vshrl.u32 %v388, 7
    %v390 = vsub.s32 3, %v389
    %v391 = vrot.slane %v374, %v390
    %396 = vmatprep.subr.mxu0 %v247
    %397 = vmatpush1.msra.mxu0 %v246
    %398 = vmatprep.subr.mxu0 %v251
    %399 = vmatpush1.msra.mxu0 %v250
    %400 = vmatprep.subr.mxu0 %v255
    %401 = vmatpush1.msra.mxu0 %v254
    %402 = vmatprep.subr.mxu0 %v259
    %403 = vmatpush1.msra.mxu0 %v258
    %404 = vmatprep.subr.mxu0 %v263
    %405 = vmatpush1.msra.mxu0 %v262
    %406 = vmatprep.subr.mxu0 %v267
    %407 = vmatpush1.msra.mxu0 %v266
    %408 = vmatprep.subr.mxu0 %v271
    %409 = vmatpush1.msra.mxu0 %v270
    %410 = vmatprep.subr.mxu0 %v275
    %411 = vmatpush1.msra.mxu0 %v274
    %412 = vmatprep.subr.mxu0 %v279
    %413 = vmatpush1.msra.mxu0 %v278
    %414 = vmatprep.subr.mxu0 %v283
    %415 = vmatpush1.msra.mxu0 %v282
    %416 = vmatprep.subr.mxu0 %v287
    %417 = vmatpush1.msra.mxu0 %v286
    %418 = vmatprep.subr.mxu0 %v291
    %419 = vmatpush1.msra.mxu0 %v290
    %420 = vmatprep.subr.mxu0 %v295
    %421 = vmatpush1.msra.mxu0 %v294
    %422 = vmatprep.subr.mxu0 %v299
    %423 = vmatpush1.msra.mxu0 %v298
    %424 = vmatprep.subr.mxu0 %v303
    %425 = vmatpush1.msra.mxu0 %v302
    %426 = vmatprep.subr.mxu0 %v307
    %427 = vmatpush1.msra.mxu0 %v306
    %428 = vmatprep.subr.mxu0 %v311
    %429 = vmatpush1.msra.mxu0 %v310
    %430 = vmatprep.subr.mxu0 %v315
    %431 = vmatpush1.msra.mxu0 %v314
    %432 = vmatprep.subr.mxu0 %v319
    %433 = vmatpush1.msra.mxu0 %v318
    %434 = vmatprep.subr.mxu0 %v323
    %435 = vmatpush1.msra.mxu0 %v322
    %436 = vmatprep.subr.mxu0 %v327
    %437 = vmatpush1.msra.mxu0 %v326
    %438 = vmatprep.subr.mxu0 %v331
    %439 = vmatpush1.msra.mxu0 %v330
    %440 = vmatprep.subr.mxu0 %v335
    %441 = vmatpush1.msra.mxu0 %v334
    %442 = vmatprep.subr.mxu0 %v339
    %443 = vmatpush1.msra.mxu0 %v338
    %444 = vmatprep.subr.mxu0 %v343
    %445 = vmatpush1.msra.mxu0 %v342
    %446 = vmatprep.subr.mxu0 %v347
    %447 = vmatpush1.msra.mxu0 %v346
    %448 = vmatprep.subr.mxu0 %v351
    %449 = vmatpush1.msra.mxu0 %v350
    %450 = vmatprep.subr.mxu0 %v355
    %451 = vmatpush1.msra.mxu0 %v354
    %452 = vmatprep.subr.mxu0 %v359
    %453 = vmatpush1.msra.mxu0 %v358
    %454 = vmatprep.subr.mxu0 %v363
    %455 = vmatpush1.msra.mxu0 %v362
    %456 = vmatprep.subr.mxu0 %v367
    %457 = vmatpush1.msra.mxu0 %v366
    %458 = vmatprep.subr.mxu0 %v371
    %459 = vmatpush1.msra.mxu0 %v370
    %460 = vmatprep.mubr.f32.mxu0 %v244
    %461 = vmatmul.mubr.f32.gmra.mrb[0].mxu0 %v241
    %v462 = vpop.f32.mrb[0].mxu0
    %v463 = vadd.f32 %v379, %v462
    %v464 = vpop.f32.mrb[0].mxu0
    %v465 = vadd.f32 %v383, %v464
    %466 = vdwg.mxu0
    %467 = vmatprep.subr.mxu0 %v249
    %468 = vmatpush1.msra.mxu0 %v248
    %469 = vmatprep.subr.mxu0 %v253
    %470 = vmatpush1.msra.mxu0 %v252
    %471 = vmatprep.subr.mxu0 %v257
    %472 = vmatpush1.msra.mxu0 %v256
    %473 = vmatprep.subr.mxu0 %v261
    %474 = vmatpush1.msra.mxu0 %v260
    %475 = vmatprep.subr.mxu0 %v265
    %476 = vmatpush1.msra.mxu0 %v264
    %477 = vmatprep.subr.mxu0 %v269
    %478 = vmatpush1.msra.mxu0 %v268
    %479 = vmatprep.subr.mxu0 %v273
    %480 = vmatpush1.msra.mxu0 %v272
    %481 = vmatprep.subr.mxu0 %v277
    %482 = vmatpush1.msra.mxu0 %v276
    %483 = vmatprep.subr.mxu0 %v281
    %484 = vmatpush1.msra.mxu0 %v280
    %485 = vmatprep.subr.mxu0 %v285
    %486 = vmatpush1.msra.mxu0 %v284
    %487 = vmatprep.subr.mxu0 %v289
    %488 = vmatpush1.msra.mxu0 %v288
    %489 = vmatprep.subr.mxu0 %v293
    %490 = vmatpush1.msra.mxu0 %v292
    %491 = vmatprep.subr.mxu0 %v297
    %492 = vmatpush1.msra.mxu0 %v296
    %493 = vmatprep.subr.mxu0 %v301
    %494 = vmatpush1.msra.mxu0 %v300
    %495 = vmatprep.subr.mxu0 %v305
    %496 = vmatpush1.msra.mxu0 %v304
    %497 = vmatprep.subr.mxu0 %v309
    %498 = vmatpush1.msra.mxu0 %v308
    %499 = vmatprep.subr.mxu0 %v313
    %500 = vmatpush1.msra.mxu0 %v312
    %501 = vmatprep.subr.mxu0 %v317
    %502 = vmatpush1.msra.mxu0 %v316
    %503 = vmatprep.subr.mxu0 %v321
    %504 = vmatpush1.msra.mxu0 %v320
    %505 = vmatprep.subr.mxu0 %v325
    %506 = vmatpush1.msra.mxu0 %v324
    %507 = vmatprep.subr.mxu0 %v329
    %508 = vmatpush1.msra.mxu0 %v328
    %509 = vmatprep.subr.mxu0 %v333
    %510 = vmatpush1.msra.mxu0 %v332
    %511 = vmatprep.subr.mxu0 %v337
    %512 = vmatpush1.msra.mxu0 %v336
    %513 = vmatprep.subr.mxu0 %v341
    %514 = vmatpush1.msra.mxu0 %v340
    %515 = vmatprep.subr.mxu0 %v345
    %516 = vmatpush1.msra.mxu0 %v344
    %517 = vmatprep.subr.mxu0 %v349
    %518 = vmatpush1.msra.mxu0 %v348
    %519 = vmatprep.subr.mxu0 %v353
    %520 = vmatpush1.msra.mxu0 %v352
    %521 = vmatprep.subr.mxu0 %v357
    %522 = vmatpush1.msra.mxu0 %v356
    %523 = vmatprep.subr.mxu0 %v361
    %524 = vmatpush1.msra.mxu0 %v360
    %525 = vmatprep.subr.mxu0 %v365
    %526 = vmatpush1.msra.mxu0 %v364
    %527 = vmatprep.subr.mxu0 %v369
    %528 = vmatpush1.msra.mxu0 %v368
    %529 = vmatprep.subr.mxu0 %v373
    %530 = vmatpush1.msra.mxu0 %v372
    %531 = vmatprep.mubr.f32.mxu0 %v244
    %532 = vmatmul.mubr.f32.gmra.mrb[0].mxu0 %v241
    %v533 = vpop.f32.mrb[0].mxu0
    %v534 = vadd.f32 %v387, %v533
    %v535 = vpop.f32.mrb[0].mxu0
    %v536 = vadd.f32 %v391, %v535
    %537 = vdwg.mxu0
    %v538 = vxor.u32 %v463, 2147483648
    %v539 = vmul.f32 %v538, 1.442695
    %v540 = vpow.pop %v539
    %v541 = vadd.f32 %v540, 1.0
    %v542 = vrcp.pop %v541
    %v543 = vmul.f32 1.0, %v542
    %v544 = vxor.u32 %v465, 2147483648
    %v545 = vmul.f32 %v544, 1.442695
    %v546 = vpow.pop %v545
    %v547 = vadd.f32 %v546, 1.0
    %v548 = vrcp.pop %v547
    %v549 = vmul.f32 1.0, %v548
    %v550 = vtanh.pop %v534
    %v551 = vxor.u32 %v536, 2147483648
    %v552 = vmul.f32 %v551, 1.442695
    %v553 = vpow.pop %v552
    %v554 = vadd.f32 %v553, 1.0
    %v555 = vrcp.pop %v554
    %v556 = vmul.f32 1.0, %v555
    %v557 = vmul.f32 %v549, %v245
    %v558 = vmul.f32 %v543, %v550
    %v559 = vadd.f32 %v557, %v558
    %v560 = vtanh.pop %v559
    %v561 = vmul.f32 %v556, %v560
    %562 = vst [vmem:[%s11] sm:$0xff] %v561
    %563 = vst [vmem:[%s12] sm:$0xff] %v559
    %s564 = scalar_lea.vmem %s2, 8
    %v565 = vld [vmem:[%s564] sm:$0xff]
    %s566 = scalar_lea.vmem %s3, 8
    %v567 = vld [vmem:[%s566] sm:$0xff]
    %v568 = vld [vmem:[#allocation8] sm:$0xff]
    %v569 = vld [vmem:[#allocation8 + $0x8] sm:$0xff]
    %v570 = vld [vmem:[#allocation8 + $0x10] sm:$0xff]
    %v571 = vld [vmem:[#allocation8 + $0x18] sm:$0xff]
    %v572 = vld [vmem:[#allocation8 + $0x20] sm:$0xff]
    %v573 = vld [vmem:[#allocation8 + $0x28] sm:$0xff]
    %v574 = vld [vmem:[#allocation8 + $0x30] sm:$0xff]
    %v575 = vld [vmem:[#allocation8 + $0x38] sm:$0xff]
    %v576 = vld [vmem:[#allocation8 + $0x40] sm:$0xff]
    %v577 = vld [vmem:[#allocation8 + $0x48] sm:$0xff]
    %v578 = vld [vmem:[#allocation8 + $0x50] sm:$0xff]
    %v579 = vld [vmem:[#allocation8 + $0x58] sm:$0xff]
    %v580 = vld [vmem:[#allocation8 + $0x60] sm:$0xff]
    %v581 = vld [vmem:[#allocation8 + $0x68] sm:$0xff]
    %v582 = vld [vmem:[#allocation8 + $0x70] sm:$0xff]
    %v583 = vld [vmem:[#allocation8 + $0x78] sm:$0xff]
    %v584 = vld [vmem:[#allocation8 + $0x80] sm:$0xff]
    %v585 = vld [vmem:[#allocation8 + $0x88] sm:$0xff]
    %v586 = vld [vmem:[#allocation8 + $0x90] sm:$0xff]
    %v587 = vld [vmem:[#allocation8 + $0x98] sm:$0xff]
    %v588 = vld [vmem:[#allocation8 + $0xa0] sm:$0xff]
    %v589 = vld [vmem:[#allocation8 + $0xa8] sm:$0xff]
    %v590 = vld [vmem:[#allocation8 + $0xb0] sm:$0xff]
    %v591 = vld [vmem:[#allocation8 + $0xb8] sm:$0xff]
    %v592 = vld [vmem:[#allocation8 + $0xc0] sm:$0xff]
    %v593 = vld [vmem:[#allocation8 + $0xc8] sm:$0xff]
    %v594 = vld [vmem:[#allocation8 + $0xd0] sm:$0xff]
    %v595 = vld [vmem:[#allocation8 + $0xd8] sm:$0xff]
    %v596 = vld [vmem:[#allocation8 + $0xe0] sm:$0xff]
    %v597 = vld [vmem:[#allocation8 + $0xe8] sm:$0xff]
    %v598 = vld [vmem:[#allocation8 + $0xf0] sm:$0xff]
    %v599 = vld [vmem:[#allocation8 + $0xf8] sm:$0xff]
    %v600 = vld [vmem:[#allocation8 + $0x100] sm:$0xff]
    %v601 = vld [vmem:[#allocation8 + $0x108] sm:$0xff]
    %v602 = vld [vmem:[#allocation8 + $0x110] sm:$0xff]
    %v603 = vld [vmem:[#allocation8 + $0x118] sm:$0xff]
    %v604 = vld [vmem:[#allocation8 + $0x120] sm:$0xff]
    %v605 = vld [vmem:[#allocation8 + $0x128] sm:$0xff]
    %v606 = vld [vmem:[#allocation8 + $0x130] sm:$0xff]
    %v607 = vld [vmem:[#allocation8 + $0x138] sm:$0xff]
    %v608 = vld [vmem:[#allocation8 + $0x140] sm:$0xff]
    %v609 = vld [vmem:[#allocation8 + $0x148] sm:$0xff]
    %v610 = vld [vmem:[#allocation8 + $0x150] sm:$0xff]
    %v611 = vld [vmem:[#allocation8 + $0x158] sm:$0xff]
    %v612 = vld [vmem:[#allocation8 + $0x160] sm:$0xff]
    %v613 = vld [vmem:[#allocation8 + $0x168] sm:$0xff]
    %v614 = vld [vmem:[#allocation8 + $0x170] sm:$0xff]
    %v615 = vld [vmem:[#allocation8 + $0x178] sm:$0xff]
    %v616 = vld [vmem:[#allocation8 + $0x180] sm:$0xff]
    %v617 = vld [vmem:[#allocation8 + $0x188] sm:$0xff]
    %v618 = vld [vmem:[#allocation8 + $0x190] sm:$0xff]
    %v619 = vld [vmem:[#allocation8 + $0x198] sm:$0xff]
    %v620 = vld [vmem:[#allocation8 + $0x1a0] sm:$0xff]
    %v621 = vld [vmem:[#allocation8 + $0x1a8] sm:$0xff]
    %v622 = vld [vmem:[#allocation8 + $0x1b0] sm:$0xff]
    %v623 = vld [vmem:[#allocation8 + $0x1b8] sm:$0xff]
    %v624 = vld [vmem:[#allocation8 + $0x1c0] sm:$0xff]
    %v625 = vld [vmem:[#allocation8 + $0x1c8] sm:$0xff]
    %v626 = vld [vmem:[#allocation8 + $0x1d0] sm:$0xff]
    %v627 = vld [vmem:[#allocation8 + $0x1d8] sm:$0xff]
    %v628 = vld [vmem:[#allocation8 + $0x1e0] sm:$0xff]
    %v629 = vld [vmem:[#allocation8 + $0x1e8] sm:$0xff]
    %v630 = vld [vmem:[#allocation8 + $0x1f0] sm:$0xff]
    %v631 = vld [vmem:[#allocation8 + $0x1f8] sm:$0xff]
    %v632 = vld [vmem:[#allocation8 + $0x200] sm:$0xff]
    %v633 = vld [vmem:[#allocation8 + $0x208] sm:$0xff]
    %v634 = vld [vmem:[#allocation8 + $0x210] sm:$0xff]
    %v635 = vld [vmem:[#allocation8 + $0x218] sm:$0xff]
    %v636 = vld [vmem:[#allocation8 + $0x220] sm:$0xff]
    %v637 = vld [vmem:[#allocation8 + $0x228] sm:$0xff]
    %v638 = vld [vmem:[#allocation8 + $0x230] sm:$0xff]
    %v639 = vld [vmem:[#allocation8 + $0x238] sm:$0xff]
    %v640 = vld [vmem:[#allocation8 + $0x240] sm:$0xff]
    %v641 = vld [vmem:[#allocation8 + $0x248] sm:$0xff]
    %v642 = vld [vmem:[#allocation8 + $0x250] sm:$0xff]
    %v643 = vld [vmem:[#allocation8 + $0x258] sm:$0xff]
    %v644 = vld [vmem:[#allocation8 + $0x260] sm:$0xff]
    %v645 = vld [vmem:[#allocation8 + $0x268] sm:$0xff]
    %v646 = vld [vmem:[#allocation8 + $0x270] sm:$0xff]
    %v647 = vld [vmem:[#allocation8 + $0x278] sm:$0xff]
    %v648 = vld [vmem:[#allocation8 + $0x280] sm:$0xff]
    %v649 = vld [vmem:[#allocation8 + $0x288] sm:$0xff]
    %v650 = vld [vmem:[#allocation8 + $0x290] sm:$0xff]
    %v651 = vld [vmem:[#allocation8 + $0x298] sm:$0xff]
    %v652 = vld [vmem:[#allocation8 + $0x2a0] sm:$0xff]
    %v653 = vld [vmem:[#allocation8 + $0x2a8] sm:$0xff]
    %v654 = vld [vmem:[#allocation8 + $0x2b0] sm:$0xff]
    %v655 = vld [vmem:[#allocation8 + $0x2b8] sm:$0xff]
    %v656 = vld [vmem:[#allocation8 + $0x2c0] sm:$0xff]
    %v657 = vld [vmem:[#allocation8 + $0x2c8] sm:$0xff]
    %v658 = vld [vmem:[#allocation8 + $0x2d0] sm:$0xff]
    %v659 = vld [vmem:[#allocation8 + $0x2d8] sm:$0xff]
    %v660 = vld [vmem:[#allocation8 + $0x2e0] sm:$0xff]
    %v661 = vld [vmem:[#allocation8 + $0x2e8] sm:$0xff]
    %v662 = vld [vmem:[#allocation8 + $0x2f0] sm:$0xff]
    %v663 = vld [vmem:[#allocation8 + $0x2f8] sm:$0xff]
    %v664 = vld [vmem:[#allocation8 + $0x300] sm:$0xff]
    %v665 = vld [vmem:[#allocation8 + $0x308] sm:$0xff]
    %v666 = vld [vmem:[#allocation8 + $0x310] sm:$0xff]
    %v667 = vld [vmem:[#allocation8 + $0x318] sm:$0xff]
    %v668 = vld [vmem:[#allocation8 + $0x320] sm:$0xff]
    %v669 = vld [vmem:[#allocation8 + $0x328] sm:$0xff]
    %v670 = vld [vmem:[#allocation8 + $0x330] sm:$0xff]
    %v671 = vld [vmem:[#allocation8 + $0x338] sm:$0xff]
    %v672 = vld [vmem:[#allocation8 + $0x340] sm:$0xff]
    %v673 = vld [vmem:[#allocation8 + $0x348] sm:$0xff]
    %v674 = vld [vmem:[#allocation8 + $0x350] sm:$0xff]
    %v675 = vld [vmem:[#allocation8 + $0x358] sm:$0xff]
    %v676 = vld [vmem:[#allocation8 + $0x360] sm:$0xff]
    %v677 = vld [vmem:[#allocation8 + $0x368] sm:$0xff]
    %v678 = vld [vmem:[#allocation8 + $0x370] sm:$0xff]
    %v679 = vld [vmem:[#allocation8 + $0x378] sm:$0xff]
    %v680 = vld [vmem:[#allocation8 + $0x380] sm:$0xff]
    %v681 = vld [vmem:[#allocation8 + $0x388] sm:$0xff]
    %v682 = vld [vmem:[#allocation8 + $0x390] sm:$0xff]
    %v683 = vld [vmem:[#allocation8 + $0x398] sm:$0xff]
    %v684 = vld [vmem:[#allocation8 + $0x3a0] sm:$0xff]
    %v685 = vld [vmem:[#allocation8 + $0x3a8] sm:$0xff]
    %v686 = vld [vmem:[#allocation8 + $0x3b0] sm:$0xff]
    %v687 = vld [vmem:[#allocation8 + $0x3b8] sm:$0xff]
    %v688 = vld [vmem:[#allocation8 + $0x3c0] sm:$0xff]
    %v689 = vld [vmem:[#allocation8 + $0x3c8] sm:$0xff]
    %v690 = vld [vmem:[#allocation8 + $0x3d0] sm:$0xff]
    %v691 = vld [vmem:[#allocation8 + $0x3d8] sm:$0xff]
    %v692 = vld [vmem:[#allocation8 + $0x3e0] sm:$0xff]
    %v693 = vld [vmem:[#allocation8 + $0x3e8] sm:$0xff]
    %v694 = vld [vmem:[#allocation8 + $0x3f0] sm:$0xff]
    %v695 = vld [vmem:[#allocation8 + $0x3f8] sm:$0xff]
    %v696 = vld [vmem:[%s7] sm:$0xf]
    %v698 = vlaneseq
    %v699 = vshrl.u32 %v698, 7
    %v700 = vsub.s32 0, %v699
    %v701 = vrot.slane %v696, %v700
    %v702 = vlaneseq
    %v703 = vshrl.u32 %v702, 7
    %v704 = vsub.s32 1, %v703
    %v705 = vrot.slane %v696, %v704
    %v706 = vlaneseq
    %v707 = vshrl.u32 %v706, 7
    %v708 = vsub.s32 2, %v707
    %v709 = vrot.slane %v696, %v708
    %v710 = vlaneseq
    %v711 = vshrl.u32 %v710, 7
    %v712 = vsub.s32 3, %v711
    %v713 = vrot.slane %v696, %v712
    %718 = vmatprep.subr.mxu0 %v569
    %719 = vmatpush1.msra.mxu0 %v568
    %720 = vmatprep.subr.mxu0 %v573
    %721 = vmatpush1.msra.mxu0 %v572
    %722 = vmatprep.subr.mxu0 %v577
    %723 = vmatpush1.msra.mxu0 %v576
    %724 = vmatprep.subr.mxu0 %v581
    %725 = vmatpush1.msra.mxu0 %v580
    %726 = vmatprep.subr.mxu0 %v585
    %727 = vmatpush1.msra.mxu0 %v584
    %728 = vmatprep.subr.mxu0 %v589
    %729 = vmatpush1.msra.mxu0 %v588
    %730 = vmatprep.subr.mxu0 %v593
    %731 = vmatpush1.msra.mxu0 %v592
    %732 = vmatprep.subr.mxu0 %v597
    %733 = vmatpush1.msra.mxu0 %v596
    %734 = vmatprep.subr.mxu0 %v601
    %735 = vmatpush1.msra.mxu0 %v600
    %736 = vmatprep.subr.mxu0 %v605
    %737 = vmatpush1.msra.mxu0 %v604
    %738 = vmatprep.subr.mxu0 %v609
    %739 = vmatpush1.msra.mxu0 %v608
    %740 = vmatprep.subr.mxu0 %v613
    %741 = vmatpush1.msra.mxu0 %v612
    %742 = vmatprep.subr.mxu0 %v617
    %743 = vmatpush1.msra.mxu0 %v616
    %744 = vmatprep.subr.mxu0 %v621
    %745 = vmatpush1.msra.mxu0 %v620
    %746 = vmatprep.subr.mxu0 %v625
    %747 = vmatpush1.msra.mxu0 %v624
    %748 = vmatprep.subr.mxu0 %v629
    %749 = vmatpush1.msra.mxu0 %v628
    %750 = vmatprep.subr.mxu0 %v633
    %751 = vmatpush1.msra.mxu0 %v632
    %752 = vmatprep.subr.mxu0 %v637
    %753 = vmatpush1.msra.mxu0 %v636
    %754 = vmatprep.subr.mxu0 %v641
    %755 = vmatpush1.msra.mxu0 %v640
    %756 = vmatprep.subr.mxu0 %v645
    %757 = vmatpush1.msra.mxu0 %v644
    %758 = vmatprep.subr.mxu0 %v649
    %759 = vmatpush1.msra.mxu0 %v648
    %760 = vmatprep.subr.mxu0 %v653
    %761 = vmatpush1.msra.mxu0 %v652
    %762 = vmatprep.subr.mxu0 %v657
    %763 = vmatpush1.msra.mxu0 %v656
    %764 = vmatprep.subr.mxu0 %v661
    %765 = vmatpush1.msra.mxu0 %v660
    %766 = vmatprep.subr.mxu0 %v665
    %767 = vmatpush1.msra.mxu0 %v664
    %768 = vmatprep.subr.mxu0 %v669
    %769 = vmatpush1.msra.mxu0 %v668
    %770 = vmatprep.subr.mxu0 %v673
    %771 = vmatpush1.msra.mxu0 %v672
    %772 = vmatprep.subr.mxu0 %v677
    %773 = vmatpush1.msra.mxu0 %v676
    %774 = vmatprep.subr.mxu0 %v681
    %775 = vmatpush1.msra.mxu0 %v680
    %776 = vmatprep.subr.mxu0 %v685
    %777 = vmatpush1.msra.mxu0 %v684
    %778 = vmatprep.subr.mxu0 %v689
    %779 = vmatpush1.msra.mxu0 %v688
    %780 = vmatprep.subr.mxu0 %v693
    %781 = vmatpush1.msra.mxu0 %v692
    %782 = vmatprep.mubr.f32.mxu0 %v565
    %783 = vmatmul.mubr.f32.gmra.mrb[0].mxu0 %v561
    %v784 = vpop.f32.mrb[0].mxu0
    %v785 = vadd.f32 %v701, %v784
    %v786 = vpop.f32.mrb[0].mxu0
    %v787 = vadd.f32 %v705, %v786
    %788 = vdwg.mxu0
    %789 = vmatprep.subr.mxu0 %v571
    %790 = vmatpush1.msra.mxu0 %v570
    %791 = vmatprep.subr.mxu0 %v575
    %792 = vmatpush1.msra.mxu0 %v574
    %793 = vmatprep.subr.mxu0 %v579
    %794 = vmatpush1.msra.mxu0 %v578
    %795 = vmatprep.subr.mxu0 %v583
    %796 = vmatpush1.msra.mxu0 %v582
    %797 = vmatprep.subr.mxu0 %v587
    %798 = vmatpush1.msra.mxu0 %v586
    %799 = vmatprep.subr.mxu0 %v591
    %800 = vmatpush1.msra.mxu0 %v590
    %801 = vmatprep.subr.mxu0 %v595
    %802 = vmatpush1.msra.mxu0 %v594
    %803 = vmatprep.subr.mxu0 %v599
    %804 = vmatpush1.msra.mxu0 %v598
    %805 = vmatprep.subr.mxu0 %v603
    %806 = vmatpush1.msra.mxu0 %v602
    %807 = vmatprep.subr.mxu0 %v607
    %808 = vmatpush1.msra.mxu0 %v606
    %809 = vmatprep.subr.mxu0 %v611
    %810 = vmatpush1.msra.mxu0 %v610
    %811 = vmatprep.subr.mxu0 %v615
    %812 = vmatpush1.msra.mxu0 %v614
    %813 = vmatprep.subr.mxu0 %v619
    %814 = vmatpush1.msra.mxu0 %v618
    %815 = vmatprep.subr.mxu0 %v623
    %816 = vmatpush1.msra.mxu0 %v622
    %817 = vmatprep.subr.mxu0 %v627
    %818 = vmatpush1.msra.mxu0 %v626
    %819 = vmatprep.subr.mxu0 %v631
    %820 = vmatpush1.msra.mxu0 %v630
    %821 = vmatprep.subr.mxu0 %v635
    %822 = vmatpush1.msra.mxu0 %v634
    %823 = vmatprep.subr.mxu0 %v639
    %824 = vmatpush1.msra.mxu0 %v638
    %825 = vmatprep.subr.mxu0 %v643
    %826 = vmatpush1.msra.mxu0 %v642
    %827 = vmatprep.subr.mxu0 %v647
    %828 = vmatpush1.msra.mxu0 %v646
    %829 = vmatprep.subr.mxu0 %v651
    %830 = vmatpush1.msra.mxu0 %v650
    %831 = vmatprep.subr.mxu0 %v655
    %832 = vmatpush1.msra.mxu0 %v654
    %833 = vmatprep.subr.mxu0 %v659
    %834 = vmatpush1.msra.mxu0 %v658
    %835 = vmatprep.subr.mxu0 %v663
    %836 = vmatpush1.msra.mxu0 %v662
    %837 = vmatprep.subr.mxu0 %v667
    %838 = vmatpush1.msra.mxu0 %v666
    %839 = vmatprep.subr.mxu0 %v671
    %840 = vmatpush1.msra.mxu0 %v670
    %841 = vmatprep.subr.mxu0 %v675
    %842 = vmatpush1.msra.mxu0 %v674
    %843 = vmatprep.subr.mxu0 %v679
    %844 = vmatpush1.msra.mxu0 %v678
    %845 = vmatprep.subr.mxu0 %v683
    %846 = vmatpush1.msra.mxu0 %v682
    %847 = vmatprep.subr.mxu0 %v687
    %848 = vmatpush1.msra.mxu0 %v686
    %849 = vmatprep.subr.mxu0 %v691
    %850 = vmatpush1.msra.mxu0 %v690
    %851 = vmatprep.subr.mxu0 %v695
    %852 = vmatpush1.msra.mxu0 %v694
    %853 = vmatprep.mubr.f32.mxu0 %v565
    %854 = vmatmul.mubr.f32.gmra.mrb[0].mxu0 %v561
    %v855 = vpop.f32.mrb[0].mxu0
    %v856 = vadd.f32 %v709, %v855
    %v857 = vpop.f32.mrb[0].mxu0
    %v858 = vadd.f32 %v713, %v857
    %859 = vdwg.mxu0
    %v860 = vxor.u32 %v785, 2147483648
    %v861 = vmul.f32 %v860, 1.442695
    %v862 = vpow.pop %v861
    %v863 = vadd.f32 %v862, 1.0
    %v864 = vrcp.pop %v863
    %v865 = vmul.f32 1.0, %v864
    %v866 = vxor.u32 %v787, 2147483648
    %v867 = vmul.f32 %v866, 1.442695
    %v868 = vpow.pop %v867
    %v869 = vadd.f32 %v868, 1.0
    %v870 = vrcp.pop %v869
    %v871 = vmul.f32 1.0, %v870
    %v872 = vtanh.pop %v856
    %v873 = vxor.u32 %v858, 2147483648
    %v874 = vmul.f32 %v873, 1.442695
    %v875 = vpow.pop %v874
    %v876 = vadd.f32 %v875, 1.0
    %v877 = vrcp.pop %v876
    %v878 = vmul.f32 1.0, %v877
    %v879 = vmul.f32 %v871, %v567
    %v880 = vmul.f32 %v865, %v872
    %v881 = vadd.f32 %v879, %v880
    %v882 = vtanh.pop %v881
    %v883 = vmul.f32 %v878, %v882
    %s884 = scalar_lea.vmem %s11, 8
    %885 = vst [vmem:[%s884] sm:$0xff] %v883
    %s886 = scalar_lea.vmem %s12, 8
    %887 = vst [vmem:[%s886] sm:$0xff] %v881
    %v888 = vld [vmem:[#allocation9] sm:$0xff]
    %v889 = vld [vmem:[#allocation9 + $0x8] sm:$0xff]
    %v890 = vld [vmem:[#allocation9 + $0x10] sm:$0xff]
    %v891 = vld [vmem:[#allocation9 + $0x18] sm:$0xff]
    %v892 = vld [vmem:[#allocation9 + $0x20] sm:$0xff]
    %v893 = vld [vmem:[#allocation9 + $0x28] sm:$0xff]
    %v894 = vld [vmem:[#allocation9 + $0x30] sm:$0xff]
    %v895 = vld [vmem:[#allocation9 + $0x38] sm:$0xff]
    %v896 = vld [vmem:[#allocation9 + $0x40] sm:$0xff]
    %v897 = vld [vmem:[#allocation9 + $0x48] sm:$0xff]
    %v898 = vld [vmem:[#allocation9 + $0x50] sm:$0xff]
    %v899 = vld [vmem:[#allocation9 + $0x58] sm:$0xff]
    %v900 = vld [vmem:[#allocation9 + $0x60] sm:$0xff]
    %v901 = vld [vmem:[#allocation9 + $0x68] sm:$0xff]
    %v902 = vld [vmem:[#allocation9 + $0x70] sm:$0xff]
    %v903 = vld [vmem:[#allocation9 + $0x78] sm:$0xff]
    %v904 = vld [vmem:[%s9] sm:$0x1]
    %v906 = vlaneseq
    %v907 = vshrl.u32 %v906, 7
    %v908 = vsub.s32 0, %v907
    %v909 = vrot.slane %v904, %v908
    %911 = vmatprep.subr.mxu0 0.0
    %912 = vmatpush1.msra.mxu0 %v888
    %913 = vmatprep.subr.mxu0 0.0
    %914 = vmatpush1.msra.mxu0 %v889
    %915 = vmatprep.subr.mxu0 0.0
    %916 = vmatpush1.msra.mxu0 %v890
    %917 = vmatprep.subr.mxu0 0.0
    %918 = vmatpush1.msra.mxu0 %v891
    %919 = vmatprep.subr.mxu0 0.0
    %920 = vmatpush1.msra.mxu0 %v892
    %921 = vmatprep.subr.mxu0 0.0
    %922 = vmatpush1.msra.mxu0 %v893
    %923 = vmatprep.subr.mxu0 0.0
    %924 = vmatpush1.msra.mxu0 %v894
    %925 = vmatprep.subr.mxu0 0.0
    %926 = vmatpush1.msra.mxu0 %v895
    %927 = vmatprep.subr.mxu0 0.0
    %928 = vmatpush1.msra.mxu0 %v896
    %929 = vmatprep.subr.mxu0 0.0
    %930 = vmatpush1.msra.mxu0 %v897
    %931 = vmatprep.subr.mxu0 0.0
    %932 = vmatpush1.msra.mxu0 %v898
    %933 = vmatprep.subr.mxu0 0.0
    %934 = vmatpush1.msra.mxu0 %v899
    %935 = vmatprep.subr.mxu0 0.0
    %936 = vmatpush1.msra.mxu0 %v900
    %937 = vmatprep.subr.mxu0 0.0
    %938 = vmatpush1.msra.mxu0 %v901
    %939 = vmatprep.subr.mxu0 0.0
    %940 = vmatpush1.msra.mxu0 %v902
    %941 = vmatprep.subr.mxu0 0.0
    %942 = vmatpush1.msra.mxu0 %v903
    %943 = vmatprep.subr.mxu0 0.0
    %944 = vmatpush1.msra.mxu0 0.0
    %945 = vmatprep.subr.mxu0 0.0
    %946 = vmatpush1.msra.mxu0 0.0
    %947 = vmatprep.subr.mxu0 0.0
    %948 = vmatpush1.msra.mxu0 0.0
    %949 = vmatprep.subr.mxu0 0.0
    %950 = vmatpush1.msra.mxu0 0.0
    %951 = vmatprep.subr.mxu0 0.0
    %952 = vmatpush1.msra.mxu0 0.0
    %953 = vmatprep.subr.mxu0 0.0
    %954 = vmatpush1.msra.mxu0 0.0
    %955 = vmatprep.subr.mxu0 0.0
    %956 = vmatpush1.msra.mxu0 0.0
    %957 = vmatprep.subr.mxu0 0.0
    %958 = vmatpush1.msra.mxu0 0.0
    %959 = vmatprep.subr.mxu0 0.0
    %960 = vmatpush1.msra.mxu0 0.0
    %961 = vmatprep.subr.mxu0 0.0
    %962 = vmatpush1.msra.mxu0 0.0
    %963 = vmatprep.subr.mxu0 0.0
    %964 = vmatpush1.msra.mxu0 0.0
    %965 = vmatprep.subr.mxu0 0.0
    %966 = vmatpush1.msra.mxu0 0.0
    %967 = vmatprep.subr.mxu0 0.0
    %968 = vmatpush1.msra.mxu0 0.0
    %969 = vmatprep.subr.mxu0 0.0
    %970 = vmatpush1.msra.mxu0 0.0
    %971 = vmatprep.subr.mxu0 0.0
    %972 = vmatpush1.msra.mxu0 0.0
    %973 = vmatprep.subr.mxu0 0.0
    %974 = vmatpush1.msra.mxu0 0.0
    %975 = vmatprep.mubr.f32.mxu0 0.0
    %976 = vmatmul.mubr.f32.gmra.mrb[0].mxu0 %v883
    %v977 = vpop.f32.mrb[0].mxu0
    %v978 = vadd.f32 %v909, %v977
    %v979 = vpop.f32.mrb[0].mxu0
    %980 = vdwg.mxu0
    %981 = vst [vmem:[%s10] sm:$0xff] %v978
    // Predicated region
    $region62: #{decoder_forward.1} parent=1 // pred_check
      _
    $region63: #{decoder_forward.1} parent=1 // pred_check_branch
      %983 = sbr.rel (0) target = $region65
    $region64: #{decoder_forward.1} parent=1 // pred_region
      _
    $region65: #{decoder_forward.1} parent=1 // pred_fallthru
      _
    // Predicated region
    $region66: #{decoder_forward.1} parent=1 // pred_check
      _
    $region67: #{decoder_forward.1} parent=1 // pred_check_branch
      %985 = sbr.rel (0) target = $region69
    $region68: #{decoder_forward.1} parent=1 // pred_region
      _
    $region69: #{decoder_forward.1} parent=1 // pred_fallthru
      _
    // Predicated region
    $region70: #{decoder_forward.1} parent=1 // pred_check
      _
    $region71: #{decoder_forward.1} parent=1 // pred_check_branch
      %987 = sbr.rel (0) target = $region73
    $region72: #{decoder_forward.1} parent=1 // pred_region
      _
    $region73: #{decoder_forward.1} parent=1 // pred_fallthru
      _
    // Predicated region
    $region74: #{decoder_forward.1} parent=1 // pred_check
      _
    $region75: #{decoder_forward.1} parent=1 // pred_check_branch
      %989 = sbr.rel (0) target = $region77
    $region76: #{decoder_forward.1} parent=1 // pred_region
      _
    $region77: #{decoder_forward.1} parent=1 // pred_fallthru
      _
    // Predicated region
    $region78: #{decoder_forward.1} parent=1 // pred_check
      _
    $region79: #{decoder_forward.1} parent=1 // pred_check_branch
      %991 = sbr.rel (0) target = $region81
    $region80: #{decoder_forward.1} parent=1 // pred_region
      _
    $region81: #{decoder_forward.1} parent=1 // pred_fallthru
      _
    // Predicated region
    $region82: #{decoder_forward.1} parent=1 // pred_check
      _
    $region83: #{decoder_forward.1} parent=1 // pred_check_branch
      %993 = sbr.rel (0) target = $region85
    $region84: #{decoder_forward.1} parent=1 // pred_region
      _
    $region85: #{decoder_forward.1} parent=1 // pred_fallthru
      _
    %994 = vsyncpa [#allocation3], 1
    %995 = vsyncpa [#allocation7], 1
    %996 = vsyncpa [#allocation10], 1
    %997 = vsyncpa [#allocation4], 1

</llo_original>
